<compile_context>
chip_gen: v5e
topology: v5e:2x2
jax: 0.10.0
libtpu: 0.0.40
codegen_flags: <defaults>
</compile_context>

<pallas_src>
import functools

import jax
import jax.numpy as jnp
from jax.experimental import pallas as pl
from jax.experimental.pallas import tpu as pltpu

LANE = 128      # TPU lane width; hidden feature dims are padded up to this
SUBLANE = 8     # f32 sublane packing


def _round_up(n, m):
    return ((n + m - 1) // m) * m


def mlp_kernel(x_ref, w1_ref, b1_ref, w2_ref, b2_ref, w3t_ref, b3_ref, o_ref):
    """One batch tile: x (TB, F) -> o (1, TB) sigmoid output (lane-major)."""
    # fc1 + ReLU   (MXU, f32 accumulation; bias/ReLU on the VPU in f32)
    h1 = jnp.dot(x_ref[...], w1_ref[...], preferred_element_type=jnp.float32)
    h1 = jnp.maximum(h1 + b1_ref[...], 0.0)
    # fc2 + ReLU
    h2 = jnp.dot(h1.astype(w2_ref.dtype), w2_ref[...],
                 preferred_element_type=jnp.float32)
    h2 = jnp.maximum(h2 + b2_ref[...], 0.0)
    # fc3 + Sigmoid, computed transposed: (1, H) contracted with (TB, H) -> (1, TB)
    # so the store into o_ref is a single lane-dense sublane row (no masked vst).
    z = jax.lax.dot_general(
        w3t_ref[...], h2.astype(w3t_ref.dtype),
        dimension_numbers=(((1,), (1,)), ((), ())),
        preferred_element_type=jnp.float32)
    z = z + b3_ref[...]                       # (1,1) bias, lane-broadcast
    o_ref[...] = jax.nn.sigmoid(z).astype(o_ref.dtype)


def _prepare_params(params, compute_dtype):
    """Pad hidden dims to LANE width; pre-transpose w3; cast matmul operands."""
    def pad_to(a, rows, cols):
        return jnp.pad(a, ((0, rows - a.shape[0]), (0, cols - a.shape[1])))

    in_features = params["w1"].shape[0]
    w1 = pad_to(params["w1"], in_features, LANE).astype(compute_dtype)   # (F, 128)
    b1 = pad_to(params["b1"], 1, LANE).astype(jnp.float32)               # (1, 128)
    w2 = pad_to(params["w2"], LANE, LANE).astype(compute_dtype)          # (128, 128)
    b2 = pad_to(params["b2"], 1, LANE).astype(jnp.float32)               # (1, 128)
    w3t = pad_to(params["w3"].T, 1, LANE).astype(compute_dtype)          # (1, 128)
    b3 = params["b3"].astype(jnp.float32)                                # (1, 1)
    return w1, b1, w2, b2, w3t, b3


@functools.partial(jax.jit, static_argnames=("block_rows", "compute_dtype"))
def neural_network_forward(x, params, *, block_rows=1024,
                           compute_dtype=jnp.float32):
    """x: (B, input_size) float32.  Returns (B, 1) float32 (matches nn.Module)."""
    B, in_features = x.shape
    w1, b1, w2, b2, w3t, b3 = _prepare_params(params, compute_dtype)

    # Batch tile: lane-width aligned when tiling; a single full-batch tile if small.
    block_rows = _round_up(block_rows, LANE)
    tb = min(block_rows, _round_up(B, SUBLANE))
    b_pad = _round_up(B, tb)
    num_tiles = b_pad // tb

    x = x.astype(compute_dtype)
    if b_pad != B:
        x = jnp.pad(x, ((0, b_pad - B), (0, 0)))

    itemsize = jnp.dtype(compute_dtype).itemsize
    cost = pl.CostEstimate(
        flops=2 * b_pad * (in_features * LANE + LANE * LANE + LANE),
        transcendentals=b_pad,                       # sigmoid
        bytes_accessed=(x.size * itemsize
                        + (w1.size + w2.size + w3t.size) * itemsize
                        + (b1.size + b2.size + b3.size) * 4
                        + b_pad * 4),
    )

    const2 = lambda i: (0, 0)
    out = pl.pallas_call(
        mlp_kernel,
        out_shape=jax.ShapeDtypeStruct((num_tiles, 1, tb), jnp.float32),
        grid_spec=pltpu.PrefetchScalarGridSpec(
            num_scalar_prefetch=0,
            grid=(num_tiles,),
            in_specs=[
                pl.BlockSpec((tb, in_features), lambda i: (i, 0)),   # streamed x
                pl.BlockSpec(w1.shape, const2),                      # resident weights
                pl.BlockSpec(b1.shape, const2),
                pl.BlockSpec(w2.shape, const2),
                pl.BlockSpec(b2.shape, const2),
                pl.BlockSpec(w3t.shape, const2),
                pl.BlockSpec(b3.shape, const2),
            ],
            out_specs=pl.BlockSpec((None, 1, tb), lambda i: (i, 0, 0)),
        ),
        compiler_params=pltpu.CompilerParams(
            dimension_semantics=("parallel",),       # megacore sharding on v7x
        ),
        cost_estimate=cost,
    )(x, w1, b1, w2, b2, w3t, b3)

    # (num_tiles, 1, TB) lane-major slab -> (B, 1), dropping any pad rows.
    return out.reshape(b_pad, 1)[:B]


def reference_forward(x, params):
    h = jnp.maximum(x @ params["w1"] + params["b1"], 0.0)
    h = jnp.maximum(h @ params["w2"] + params["b2"], 0.0)
    return jax.nn.sigmoid(h @ params["w3"] + params["b3"])


def init_params(input_size, key):
    """Deterministic init mimicking nn.Linear's uniform(-1/sqrt(fan_in), 1/sqrt(fan_in))."""
    ks = jax.random.split(key, 6)

    def linear(kw, kb, fan_in, fan_out):
        bound = 1.0 / jnp.sqrt(jnp.float32(fan_in))
        w = jax.random.uniform(kw, (fan_in, fan_out), jnp.float32, -bound, bound)
        b = jax.random.uniform(kb, (1, fan_out), jnp.float32, -bound, bound)
        return w, b

    w1, b1 = linear(ks[0], ks[1], input_size, 64)
    w2, b2 = linear(ks[2], ks[3], 64, 32)
    w3, b3 = linear(ks[4], ks[5], 32, 1)
    return {"w1": w1, "b1": b1, "w2": w2, "b2": b2, "w3": w3, "b3": b3}


if __name__ == "__main__":
    key = jax.random.PRNGKey(0)
    k_x, k_x2, k_p = jax.random.split(key, 3)

    input_size = 16
    params = init_params(input_size, k_p)

    # Small batch (single tile), f32: strict check against plain-JAX reference.
    x_small = jax.random.normal(k_x, (8, input_size), dtype=jnp.float32)
    out_small = jax.block_until_ready(neural_network_forward(x_small, params))
    ref_small = reference_forward(x_small, params)
    assert out_small.shape == (8, 1)
    assert jnp.allclose(out_small, ref_small, atol=1e-5, rtol=1e-5)

    # Multi-tile grid with a ragged tail (exercises batch tiling + row padding).
    x_big = jax.random.normal(k_x2, (300, input_size), dtype=jnp.float32)
    out_big = jax.block_until_ready(
        neural_network_forward(x_big, params, block_rows=128))
    ref_big = reference_forward(x_big, params)
    assert out_big.shape == (300, 1)
    assert jnp.allclose(out_big, ref_big, atol=1e-5, rtol=1e-5)

    # bf16 streaming path (halves HBM traffic on v6e/v7x); looser tolerance.
    out_bf16 = jax.block_until_ready(
        neural_network_forward(x_big, params, block_rows=128,
                               compute_dtype=jnp.bfloat16))
    assert out_bf16.shape == (300, 1)
    assert jnp.allclose(out_bf16, ref_big, atol=3e-2, rtol=3e-2)

    print("KERNEL_OK")
</pallas_src>

<mosaic_0001>
module attributes {stable_mosaic.version = 11 : i64} {
  func.func @mlp_kernel(%arg0: i32, %arg1: memref<8x16xf32, #tpu.memory_space<vmem>>, %arg2: memref<16x128xf32, #tpu.memory_space<vmem>>, %arg3: memref<1x128xf32, #tpu.memory_space<vmem>>, %arg4: memref<128x128xf32, #tpu.memory_space<vmem>>, %arg5: memref<1x128xf32, #tpu.memory_space<vmem>>, %arg6: memref<1x128xf32, #tpu.memory_space<vmem>>, %arg7: memref<1x1xf32, #tpu.memory_space<vmem>>, %arg8: memref<1x1x8xf32, #tpu.memory_space<vmem>>) attributes {dimension_semantics = [#tpu.dimension_semantics<parallel>], iteration_bounds = array<i64: 1>, scalar_prefetch = 0 : i64, scratch_operands = 0 : i64, tpu.core_type = #tpu.core_type<tc>, window_params = [{transform_indices = @transform_0, window_bounds = array<i64: 8, 16>}, {pipeline_mode = #tpu.pipeline_mode<synchronous>, transform_indices = @transform_1, window_bounds = array<i64: 16, 128>}, {pipeline_mode = #tpu.pipeline_mode<synchronous>, transform_indices = @transform_2, window_bounds = array<i64: 1, 128>}, {pipeline_mode = #tpu.pipeline_mode<synchronous>, transform_indices = @transform_3, window_bounds = array<i64: 128, 128>}, {pipeline_mode = #tpu.pipeline_mode<synchronous>, transform_indices = @transform_4, window_bounds = array<i64: 1, 128>}, {pipeline_mode = #tpu.pipeline_mode<synchronous>, transform_indices = @transform_5, window_bounds = array<i64: 1, 128>}, {pipeline_mode = #tpu.pipeline_mode<synchronous>, transform_indices = @transform_6, window_bounds = array<i64: 1, 1>}, {transform_indices = @transform_7, window_bounds = array<i64: 1, 1, 8>}]} {
    %c0 = arith.constant 0 : index
    %c0_0 = arith.constant 0 : index
    %0 = vector.load %arg1[%c0, %c0_0] : memref<8x16xf32, #tpu.memory_space<vmem>>, vector<8x16xf32>
    %c0_1 = arith.constant 0 : index
    %c0_2 = arith.constant 0 : index
    %1 = vector.load %arg2[%c0_1, %c0_2] : memref<16x128xf32, #tpu.memory_space<vmem>>, vector<16x128xf32>
    %cst = arith.constant dense<0.000000e+00> : vector<8x128xf32>
    %2 = tpu.matmul %0, %1, %cst {dimension_numbers = #tpu.dot_dimension_numbers<[1], [0], [0], [1], [0, 0, 1, 1], [], []>} : vector<8x16xf32>, vector<16x128xf32>, vector<8x128xf32> -> vector<8x128xf32>
    %c0_3 = arith.constant 0 : index
    %c0_4 = arith.constant 0 : index
    %3 = vector.load %arg3[%c0_3, %c0_4] : memref<1x128xf32, #tpu.memory_space<vmem>>, vector<1x128xf32>
    %4 = vector.broadcast %3 : vector<1x128xf32> to vector<8x128xf32>
    %5 = arith.addf %2, %4 : vector<8x128xf32>
    %cst_5 = arith.constant 0.000000e+00 : f32
    %6 = vector.broadcast %cst_5 : f32 to vector<8x128xf32>
    %7 = arith.maximumf %5, %6 : vector<8x128xf32>
    %c0_6 = arith.constant 0 : index
    %c0_7 = arith.constant 0 : index
    %8 = vector.load %arg4[%c0_6, %c0_7] : memref<128x128xf32, #tpu.memory_space<vmem>>, vector<128x128xf32>
    %cst_8 = arith.constant dense<0.000000e+00> : vector<8x128xf32>
    %9 = tpu.matmul %7, %8, %cst_8 {dimension_numbers = #tpu.dot_dimension_numbers<[1], [0], [0], [1], [0, 0, 1, 1], [], []>} : vector<8x128xf32>, vector<128x128xf32>, vector<8x128xf32> -> vector<8x128xf32>
    %c0_9 = arith.constant 0 : index
    %c0_10 = arith.constant 0 : index
    %10 = vector.load %arg5[%c0_9, %c0_10] : memref<1x128xf32, #tpu.memory_space<vmem>>, vector<1x128xf32>
    %11 = vector.broadcast %10 : vector<1x128xf32> to vector<8x128xf32>
    %12 = arith.addf %9, %11 : vector<8x128xf32>
    %cst_11 = arith.constant 0.000000e+00 : f32
    %13 = vector.broadcast %cst_11 : f32 to vector<8x128xf32>
    %14 = arith.maximumf %12, %13 : vector<8x128xf32>
    %c0_12 = arith.constant 0 : index
    %c0_13 = arith.constant 0 : index
    %15 = vector.load %arg6[%c0_12, %c0_13] : memref<1x128xf32, #tpu.memory_space<vmem>>, vector<1x128xf32>
    %cst_14 = arith.constant dense<0.000000e+00> : vector<1x8xf32>
    %16 = tpu.matmul %15, %14, %cst_14 {dimension_numbers = #tpu.dot_dimension_numbers<[1], [1], [0], [0], [0, 0, 1, 0], [], []>} : vector<1x128xf32>, vector<8x128xf32>, vector<1x8xf32> -> vector<1x8xf32>
    %c0_15 = arith.constant 0 : index
    %c0_16 = arith.constant 0 : index
    %17 = vector.load %arg7[%c0_15, %c0_16] : memref<1x1xf32, #tpu.memory_space<vmem>>, vector<1x1xf32>
    %18 = vector.broadcast %17 : vector<1x1xf32> to vector<1x8xf32>
    %19 = arith.addf %16, %18 : vector<1x8xf32>
    %20 = arith.negf %19 : vector<1x8xf32>
    %21 = math.exp %20 : vector<1x8xf32>
    %cst_17 = arith.constant 1.000000e+00 : f32
    %22 = vector.broadcast %cst_17 : f32 to vector<1x8xf32>
    %23 = arith.addf %22, %21 : vector<1x8xf32>
    %24 = arith.divf %22, %23 : vector<1x8xf32>
    %c0_18 = arith.constant 0 : index
    %c0_19 = arith.constant 0 : index
    %c0_20 = arith.constant 0 : index
    %25 = vector.load %arg8[%c0_18, %c0_19, %c0_20] : memref<1x1x8xf32, #tpu.memory_space<vmem>>, vector<1x1x8xf32>
    %26 = vector.shape_cast %25 : vector<1x1x8xf32> to vector<1x8xf32>
    %27 = vector.shape_cast %24 : vector<1x8xf32> to vector<1x1x8xf32>
    tpu.vector_store %arg8[%c0_18, %c0_19, %c0_20], %27 {strides = array<i32>} : memref<1x1x8xf32, #tpu.memory_space<vmem>>, vector<1x1x8xf32>,
    return
  }
  func.func @transform_0(%arg0: i32) -> (i32, i32) {
    %c0_i32 = arith.constant 0 : i32
    %c0_i32_0 = arith.constant 0 : i32
    return %arg0, %c0_i32 : i32, i32
  }
  func.func @transform_1(%arg0: i32) -> (i32, i32) {
    %c0_i32 = arith.constant 0 : i32
    %c0_i32_0 = arith.constant 0 : i32
    %c0_i32_1 = arith.constant 0 : i32
    return %c0_i32, %c0_i32_0 : i32, i32
  }
  func.func @transform_2(%arg0: i32) -> (i32, i32) {
    %c0_i32 = arith.constant 0 : i32
    %c0_i32_0 = arith.constant 0 : i32
    %c0_i32_1 = arith.constant 0 : i32
    return %c0_i32, %c0_i32_0 : i32, i32
  }
  func.func @transform_3(%arg0: i32) -> (i32, i32) {
    %c0_i32 = arith.constant 0 : i32
    %c0_i32_0 = arith.constant 0 : i32
    %c0_i32_1 = arith.constant 0 : i32
    return %c0_i32, %c0_i32_0 : i32, i32
  }
  func.func @transform_4(%arg0: i32) -> (i32, i32) {
    %c0_i32 = arith.constant 0 : i32
    %c0_i32_0 = arith.constant 0 : i32
    %c0_i32_1 = arith.constant 0 : i32
    return %c0_i32, %c0_i32_0 : i32, i32
  }
  func.func @transform_5(%arg0: i32) -> (i32, i32) {
    %c0_i32 = arith.constant 0 : i32
    %c0_i32_0 = arith.constant 0 : i32
    %c0_i32_1 = arith.constant 0 : i32
    return %c0_i32, %c0_i32_0 : i32, i32
  }
  func.func @transform_6(%arg0: i32) -> (i32, i32) {
    %c0_i32 = arith.constant 0 : i32
    %c0_i32_0 = arith.constant 0 : i32
    %c0_i32_1 = arith.constant 0 : i32
    return %c0_i32, %c0_i32_0 : i32, i32
  }
  func.func @transform_7(%arg0: i32) -> (i32, i32, i32) {
    %c0_i32 = arith.constant 0 : i32
    %c0_i32_0 = arith.constant 0 : i32
    %c0_i32_1 = arith.constant 0 : i32
    return %arg0, %c0_i32, %c0_i32_0 : i32, i32, i32
  }
}

</mosaic_0001>

<llo_original>
// kernel: neural_network_forward.1
$region0: #{neural_network_forward.1}
  #allocation0 [shape = 'u32[]', space=smem, size = 0x4, offset = 0x4, fixed_abs, tag = 'smem constant byte address 0x4 - core index']
  #allocation1 [shape = 'u32[72,128]{1,0:T(1,128)}', space=vmem, size = 0x9000, scoped, tag = 'internal scratch']
  #allocation2 [shape = 'f32[1,1]{1,0:T(1,128)S(1)}', space=vmem, size = 0x200, scoped, tag = 'scoped memory for neural_network_forward.1']
  %s0 = inlined_call_operand.vmem [shape: f32[8,16], index: 0, kind: input, shape index: {}]
  %s1 = inlined_call_operand.vmem [shape: f32[16,128], index: 1, kind: input, shape index: {}]
  %s2 = inlined_call_operand.vmem [shape: f32[1,128], index: 2, kind: input, shape index: {}]
  %s3 = inlined_call_operand.vmem [shape: f32[128,128], index: 3, kind: input, shape index: {}]
  %s4 = inlined_call_operand.vmem [shape: f32[1,128], index: 4, kind: input, shape index: {}]
  %s5 = inlined_call_operand.vmem [shape: f32[1,128], index: 5, kind: input, shape index: {}]
  %s6 = inlined_call_operand.<no memory space> [shape: f32[1,1], index: 6, kind: input, shape index: {}]
  %s7 = inlined_call_operand.hbm [shape: f32[1,1,8], index: 7, kind: output, shape index: {}]
  %s8 = sld [smem:[#allocation0]]
  $region38: #{neural_network_forward.1} parent=0
    _
  %s10 = ssub.s32 1, %s8
  %s11 = scalar_select 0, %s10, %s8
  %v12 = vstv %s6
  %13 = vst [vmem:[#allocation2] sm:$0x1] %v12
  $region1: #{neural_network_forward.1} parent=0
    #allocation3 [shape = 'u8[512]{0}', space=vmem, size = 0x400, scoped, tag = 'output window, operand 0, single buffered']
    #allocation4 [shape = 's32[1]{0}', space=sflag, size = 0x4, scoped, tag = 'scoped memory for neural_network_forward.1']
    %14 = vsyncpa [#allocation4], 0
    // Predicated region
    $region2: #{neural_network_forward.1} parent=1 // pred_check
      _
    $region3: #{neural_network_forward.1} parent=1 // pred_check_branch
      %16 = sbr.rel (0) target = $region5
    $region4: #{neural_network_forward.1} parent=1 // pred_region
      _
    $region5: #{neural_network_forward.1} parent=1 // pred_fallthru
      _
    // Predicated region
    $region6: #{neural_network_forward.1} parent=1 // pred_check
      _
    $region7: #{neural_network_forward.1} parent=1 // pred_check_branch
      %18 = sbr.rel (0) target = $region9
    $region8: #{neural_network_forward.1} parent=1 // pred_region
      _
    $region9: #{neural_network_forward.1} parent=1 // pred_fallthru
      _
    // Predicated region
    $region10: #{neural_network_forward.1} parent=1 // pred_check
      _
    $region11: #{neural_network_forward.1} parent=1 // pred_check_branch
      %20 = sbr.rel (0) target = $region13
    $region12: #{neural_network_forward.1} parent=1 // pred_region
      _
    $region13: #{neural_network_forward.1} parent=1 // pred_fallthru
      _
    // Predicated region
    $region14: #{neural_network_forward.1} parent=1 // pred_check
      _
    $region15: #{neural_network_forward.1} parent=1 // pred_check_branch
      %22 = sbr.rel (0) target = $region17
    $region16: #{neural_network_forward.1} parent=1 // pred_region
      _
    $region17: #{neural_network_forward.1} parent=1 // pred_fallthru
      _
    // Predicated region
    $region18: #{neural_network_forward.1} parent=1 // pred_check
      _
    $region19: #{neural_network_forward.1} parent=1 // pred_check_branch
      %24 = sbr.rel (0) target = $region21
    $region20: #{neural_network_forward.1} parent=1 // pred_region
      _
    $region21: #{neural_network_forward.1} parent=1 // pred_fallthru
      _
    // Predicated region
    $region22: #{neural_network_forward.1} parent=1 // pred_check
      _
    $region23: #{neural_network_forward.1} parent=1 // pred_check_branch
      %26 = sbr.rel (0) target = $region25
    $region24: #{neural_network_forward.1} parent=1 // pred_region
      _
    $region25: #{neural_network_forward.1} parent=1 // pred_fallthru
      _
    // Predicated region
    $region26: #{neural_network_forward.1} parent=1 // pred_check
      _
    $region27: #{neural_network_forward.1} parent=1 // pred_check_branch
      %28 = sbr.rel (0) target = $region29
    $region28: #{neural_network_forward.1} parent=1 // pred_region
      _
    $region29: #{neural_network_forward.1} parent=1 // pred_fallthru
      _
    %v29 = vld [vmem:[%s0] sm:$0xff]
    %v30 = vld [vmem:[%s1] sm:$0xff]
    %v31 = vld [vmem:[%s1 + $0x8] sm:$0xff]
    %v32 = vld [vmem:[%s2] sm:$0x1]
    %v34 = vperm.slane %v32, 0
    %vm36 = vcmask 130048
    %v38 = vsel %vm36, %v29, 0
    %40 = vmatpush.msra.mxu0 0.0
    %41 = vmatpush.msra.mxu0 0.0
    %42 = vmatpush.msra.mxu0 0.0
    %43 = vmatpush.msra.mxu0 0.0
    %44 = vmatpush.msra.mxu0 0.0
    %45 = vmatpush.msra.mxu0 0.0
    %46 = vmatpush.msra.mxu0 0.0
    %47 = vmatpush.msra.mxu0 0.0
    %48 = vmatpush.msra.mxu0 0.0
    %49 = vmatpush.msra.mxu0 0.0
    %50 = vmatpush.msra.mxu0 0.0
    %51 = vmatpush.msra.mxu0 0.0
    %52 = vmatpush.msra.mxu0 0.0
    %53 = vmatpush.msra.mxu0 0.0
    %54 = vmatpush.msra.mxu0 %v31
    %55 = vmatpush.msra.mxu0 %v30
    %56 = vmatmul.f32.gmra.mxu0 %v38
    %v57 = vpop.f32.mrf.mxu0
    %v58 = vadd.f32 %v34, %v57
    %59 = vdwg.mxu0
    %v60 = vmax.f32 %v58, 0.0
    %v61 = vld [vmem:[%s3] sm:$0xff]
    %v62 = vld [vmem:[%s3 + $0x8] sm:$0xff]
    %v63 = vld [vmem:[%s3 + $0x10] sm:$0xff]
    %v64 = vld [vmem:[%s3 + $0x18] sm:$0xff]
    %v65 = vld [vmem:[%s3 + $0x20] sm:$0xff]
    %v66 = vld [vmem:[%s3 + $0x28] sm:$0xff]
    %v67 = vld [vmem:[%s3 + $0x30] sm:$0xff]
    %v68 = vld [vmem:[%s3 + $0x38] sm:$0xff]
    %v69 = vld [vmem:[%s3 + $0x40] sm:$0xff]
    %v70 = vld [vmem:[%s3 + $0x48] sm:$0xff]
    %v71 = vld [vmem:[%s3 + $0x50] sm:$0xff]
    %v72 = vld [vmem:[%s3 + $0x58] sm:$0xff]
    %v73 = vld [vmem:[%s3 + $0x60] sm:$0xff]
    %v74 = vld [vmem:[%s3 + $0x68] sm:$0xff]
    %v75 = vld [vmem:[%s3 + $0x70] sm:$0xff]
    %v76 = vld [vmem:[%s3 + $0x78] sm:$0xff]
    %v77 = vld [vmem:[%s4] sm:$0x1]
    %v79 = vperm.slane %v77, 0
    %81 = vmatpush.msra.mxu0 %v76
    %82 = vmatpush.msra.mxu0 %v75
    %83 = vmatpush.msra.mxu0 %v74
    %84 = vmatpush.msra.mxu0 %v73
    %85 = vmatpush.msra.mxu0 %v72
    %86 = vmatpush.msra.mxu0 %v71
    %87 = vmatpush.msra.mxu0 %v70
    %88 = vmatpush.msra.mxu0 %v69
    %89 = vmatpush.msra.mxu0 %v68
    %90 = vmatpush.msra.mxu0 %v67
    %91 = vmatpush.msra.mxu0 %v66
    %92 = vmatpush.msra.mxu0 %v65
    %93 = vmatpush.msra.mxu0 %v64
    %94 = vmatpush.msra.mxu0 %v63
    %95 = vmatpush.msra.mxu0 %v62
    %96 = vmatpush.msra.mxu0 %v61
    %97 = vmatmul.f32.gmra.mxu0 %v60
    %v98 = vpop.f32.mrf.mxu0
    %v99 = vadd.f32 %v79, %v98
    %100 = vdwg.mxu0
    %v101 = vmax.f32 %v99, 0.0
    %v102 = vld [vmem:[%s5] sm:$0x1]
    %v103 = vld [vmem:[#allocation2] sm:$0x1]
    %105 = vset.pattern.permute.xlu0 0
    %106 = vperm.xlu0 %105, %v103
    %v107 = vpop.permute.xlu0 %106
    %v109 = vperm.slane %v107, 0
    %110 = vmatpush.xpose.msra.mxu0 0.0
    %111 = vmatpush.xpose.msra.mxu0 0.0
    %112 = vmatpush.xpose.msra.mxu0 0.0
    %113 = vmatpush.xpose.msra.mxu0 0.0
    %114 = vmatpush.xpose.msra.mxu0 0.0
    %115 = vmatpush.xpose.msra.mxu0 0.0
    %116 = vmatpush.xpose.msra.mxu0 0.0
    %117 = vmatpush.xpose.msra.mxu0 0.0
    %118 = vmatpush.xpose.msra.mxu0 0.0
    %119 = vmatpush.xpose.msra.mxu0 0.0
    %120 = vmatpush.xpose.msra.mxu0 0.0
    %121 = vmatpush.xpose.msra.mxu0 0.0
    %122 = vmatpush.xpose.msra.mxu0 0.0
    %123 = vmatpush.xpose.msra.mxu0 0.0
    %124 = vmatpush.xpose.msra.mxu0 0.0
    %125 = vmatpush.xpose.msra.mxu0 %v101
    %126 = vmatmul.f32.gmra.mxu0 %v102
    %v127 = vpop.f32.mrf.mxu0
    %v128 = vadd.f32 %v109, %v127
    %129 = vdwg.mxu0
    %v130 = vxor.u32 %v128, 2147483648
    %v131 = vmul.f32 %v130, 1.442695
    %v132 = vpow.pop %v131
    %v133 = vadd.f32 %v132, 1.0
    %v134 = vrcp.pop %v133
    %v135 = vmul.f32 %v133, %v134
    %v136 = vsub.f32 1.0, %v135
    %v137 = vmul.f32 %v134, %v136
    %v138 = vadd.f32 %v134, %v137
    %vm139 = vweird.f32 %v133
    %vm140 = vweird.f32 %v134
    %vm141 = vmor %vm139, %vm140
    %v142 = vsel %vm141, %v134, %v138
    %v143 = vand.u32 2147483647, %v133
    %vm144 = vcmp.eq.f32.partialorder %v143, 8.507059e+37
    %v145 = vand.u32 %v133, 2147483648
    %v146 = vor.u32 1.1754944e-38, %v145
    %v147 = vsel %vm144, %v146, %v142
    %v148 = vmul.f32 1.0, %v147
    %vm149 = vcmask 57344
    %150 = vst.msk [vmem:[#allocation3] sm:$0x1] %vm149, %v148
    // Predicated region
    $region30: #{neural_network_forward.1} parent=1 // pred_check
      _
    $region31: #{neural_network_forward.1} parent=1 // pred_check_branch
      %152 = sbr.rel (0) target = $region33
    $region32: #{neural_network_forward.1} parent=1 // pred_region
      %154 = vsyncadd [#allocation4], 0
      %s156 = sshll.u32 [#allocation3], 4
      %s157 = int_to_ptr.vmem [resolvable:$true] %s156
      %s158 = sshll.u32 %s7, 4
      %s159 = int_to_ptr.hbm [resolvable:$true] %s158
      %161 = dma.vmem_to_hbm [thread:$0]  %s157, 16, %s159, [#allocation4]
    $region33: #{neural_network_forward.1} parent=1 // pred_fallthru
      _
    // Predicated region
    $region34: #{neural_network_forward.1} parent=1 // pred_check
      _
    $region35: #{neural_network_forward.1} parent=1 // pred_check_branch
      %163 = sbr.rel (0) target = $region37
    $region36: #{neural_network_forward.1} parent=1 // pred_region
      %165 = dma.done [#allocation4], 16
    $region37: #{neural_network_forward.1} parent=1 // pred_fallthru
      _
    %166 = vsyncpa [#allocation4], 1

</llo_original>
